<compile_context>
chip_gen: v7x
topology: tpu7x:2x2x1
jax: 0.10.0
libtpu: 0.0.40
codegen_flags: <defaults>
</compile_context>

<pallas_src>
import jax
import jax.numpy as jnp
from jax.experimental import pallas as pl
from jax.experimental.pallas import tpu as pltpu

_LANE = 128      # vreg lane width (last dim)
_SUBLANE = 8     # vreg sublane width (second-to-last dim, f32)


def _round_up(x, m):
    return (x + m - 1) // m * m


def _mlp_kernel(x_ref, w1_ref, b1_ref, w2_ref, b2_ref, w3_ref, b3_ref, o_ref):
    # Fused 3-layer MLP on one VMEM-resident batch tile.
    # Matmul inputs use the weights' dtype (f32, or bf16 on the low-precision path);
    # accumulation, bias add and tanh stay f32.
    cdt = w1_ref.dtype
    x = x_ref[...].astype(cdt)
    h1 = jnp.tanh(
        jnp.dot(x, w1_ref[...], preferred_element_type=jnp.float32) + b1_ref[...]
    )
    h2 = jnp.tanh(
        jnp.dot(h1.astype(cdt), w2_ref[...], preferred_element_type=jnp.float32)
        + b2_ref[...]
    )
    o_ref[...] = (
        jnp.dot(h2.astype(cdt), w3_ref[...], preferred_element_type=jnp.float32)
        + b3_ref[...]
    ).astype(o_ref.dtype)


def prepare_params(params, *, use_bf16=False):
    """One-time param prep (hoisted out of the per-call path).

    * transposes PyTorch (out, in) weights to (in, out),
    * leaves the HBM-facing dims UNPADDED (obs_dim rows of w1, action_dim cols of w3),
    * pads only the internal hidden dim to a multiple of 128 lanes so intermediate
      activations are lane-dense.  This is semantics-preserving: padded hidden columns
      are tanh(0 + 0) = 0 and hit zero weight rows in the next layer,
    * optionally casts weights to bf16 (matmul inputs); biases stay f32.
    """
    hidden, obs_dim = params["w1"].shape
    action_dim = params["w3"].shape[0]
    hid_p = _round_up(hidden, _LANE)
    wdt = jnp.bfloat16 if use_bf16 else jnp.float32

    def pad_w(w_t, rows, cols):  # w_t is already (in, out)
        w_t = w_t.astype(jnp.float32)
        return jnp.pad(
            w_t, ((0, rows - w_t.shape[0]), (0, cols - w_t.shape[1]))
        ).astype(wdt)

    def pad_b(b, cols):
        b = b.astype(jnp.float32).reshape(1, -1)
        return jnp.pad(b, ((0, 0), (0, cols - b.shape[1])))

    arrays = (
        pad_w(params["w1"].T, obs_dim, hid_p),     # (obs_dim, hid_p)
        pad_b(params["b1"], hid_p),                # (1, hid_p) f32
        pad_w(params["w2"].T, hid_p, hid_p),       # (hid_p, hid_p)
        pad_b(params["b2"], hid_p),                # (1, hid_p) f32
        pad_w(params["w3"].T, hid_p, action_dim),  # (hid_p, action_dim)
        pad_b(params["b3"], action_dim),           # (1, action_dim) f32
    )
    dims = dict(obs_dim=obs_dim, hidden=hidden, action_dim=action_dim,
                hid_pad=hid_p, use_bf16=use_bf16)
    return arrays, dims


def stable_baseline_policy_forward(obs, prepped, *, block_b=1024):
    """obs: (B, obs_dim) float array. prepped: output of prepare_params(params)."""
    (w1, b1, w2, b2, w3, b3), dims = prepped
    B, obs_dim = obs.shape
    assert obs_dim == dims["obs_dim"]
    hid_p, action_dim = dims["hid_pad"], dims["action_dim"]

    if dims["use_bf16"]:
        # Halves the dominant activation HBM read; matmuls accumulate in f32.
        obs = obs.astype(jnp.bfloat16)
    else:
        obs = obs.astype(jnp.float32)

    if B <= block_b:
        # Whole batch in one tile: block shape == full array dims (always legal),
        # so no batch/feature padding and no post-slice are needed at all.
        tb = B
    else:
        # Large batch: tile it.  Keep >= 4 grid steps so both v7x TensorCores get
        # work on the "parallel" axis, but never below 128 rows (per-grid-step
        # overhead ~0.35us).  Round to 16 sublanes (layout-friendly for f32 & bf16);
        # the ragged last block is handled by Pallas (OOB output writes dropped).
        tb = max(128, min(block_b, _round_up(pl.cdiv(B, 4), 16)))
    grid = (pl.cdiv(B, tb),)

    x_item = jnp.dtype(obs.dtype).itemsize
    w_item = jnp.dtype(w1.dtype).itemsize
    cost = pl.CostEstimate(
        flops=2 * B * (obs_dim * hid_p + hid_p * hid_p + hid_p * action_dim),
        transcendentals=2 * B * hid_p,
        bytes_accessed=(B * obs_dim * x_item          # obs read (unpadded)
                        + B * action_dim * 4          # output write (unpadded)
                        + w_item * (obs_dim * hid_p + hid_p * hid_p + hid_p * action_dim)
                        + 4 * (2 * hid_p + action_dim)),
    )

    out = pl.pallas_call(
        _mlp_kernel,
        out_shape=jax.ShapeDtypeStruct((B, action_dim), jnp.float32),
        grid=grid,
        in_specs=[
            # activations: tiled over batch, feature dim unpadded (contiguous DMA)
            pl.BlockSpec((tb, obs_dim), lambda i: (i, 0)),
            # weights / biases: constant index_map -> DMA'd once, VMEM-resident
            pl.BlockSpec((obs_dim, hid_p), lambda i: (0, 0)),
            pl.BlockSpec((1, hid_p), lambda i: (0, 0)),
            pl.BlockSpec((hid_p, hid_p), lambda i: (0, 0)),
            pl.BlockSpec((1, hid_p), lambda i: (0, 0)),
            pl.BlockSpec((hid_p, action_dim), lambda i: (0, 0)),
            pl.BlockSpec((1, action_dim), lambda i: (0, 0)),
        ],
        # narrow (tb, action_dim) writeback: contiguous in HBM; a few vst.msk per
        # tile is far cheaper than a 128-lane padded store + post-slice pass.
        out_specs=pl.BlockSpec((tb, action_dim), lambda i: (i, 0)),
        compiler_params=pltpu.CompilerParams(
            dimension_semantics=("parallel",),  # shard batch across TCs (v7x megacore)
        ),
        cost_estimate=cost,
    )(obs, w1, b1, w2, b2, w3, b3)

    return out


def _reference_forward(obs, params):
    h = jnp.tanh(obs @ params["w1"].T + params["b1"])
    h = jnp.tanh(h @ params["w2"].T + params["b2"])
    return h @ params["w3"].T + params["b3"]


def init_params(key, obs_dim, hidden_size, action_dim):
    """Deterministic init matching the PyTorch module's parameter shapes."""
    ks = jax.random.split(key, 6)

    def lin(kw, kb, fan_in, fan_out):
        bound = 1.0 / jnp.sqrt(fan_in)
        w = jax.random.uniform(kw, (fan_out, fan_in), jnp.float32, -bound, bound)
        b = jax.random.uniform(kb, (fan_out,), jnp.float32, -bound, bound)
        return w, b

    w1, b1 = lin(ks[0], ks[1], obs_dim, hidden_size)
    w2, b2 = lin(ks[2], ks[3], hidden_size, hidden_size)
    w3, b3 = lin(ks[4], ks[5], hidden_size, action_dim)
    return {"w1": w1, "b1": b1, "w2": w2, "b2": b2, "w3": w3, "b3": b3}


if __name__ == "__main__":
    key = jax.random.PRNGKey(0)
    obs_dim, hidden_size, action_dim, batch = 16, 32, 8, 2

    k_obs, k_params = jax.random.split(key)
    obs = jax.random.normal(k_obs, (batch, obs_dim), dtype=jnp.float32)
    params = init_params(k_params, obs_dim, hidden_size, action_dim)

    # f32 path (exact parity with the PyTorch module)
    prepped = prepare_params(params)          # hoisted: done once, reused every call
    out = jax.block_until_ready(stable_baseline_policy_forward(obs, prepped))
    ref = _reference_forward(obs, params)
    assert out.shape == (batch, action_dim)
    assert jnp.allclose(out, ref, atol=1e-5, rtol=1e-5), "mismatch vs reference"

    # larger batch (exercises the single full-array tile, no padding/slicing path)
    big_obs = jax.random.normal(key, (300, obs_dim), dtype=jnp.float32)
    big_out = jax.block_until_ready(stable_baseline_policy_forward(big_obs, prepped))
    big_ref = _reference_forward(big_obs, params)
    assert big_out.shape == (300, action_dim)
    assert jnp.allclose(big_out, big_ref, atol=1e-4, rtol=1e-4), "mismatch (big batch)"

    # bf16 I/O path (v6e/v7x recommendation): f32 accumulate, looser tolerance
    prepped_bf16 = prepare_params(params, use_bf16=True)
    bf_out = jax.block_until_ready(stable_baseline_policy_forward(big_obs, prepped_bf16))
    assert bf_out.shape == (300, action_dim)
    assert jnp.allclose(bf_out, big_ref, atol=1e-1, rtol=1e-1), "mismatch (bf16 path)"

    print("KERNEL_OK")
</pallas_src>

<mosaic_0001>
module attributes {stable_mosaic.version = 11 : i64} {
  func.func @_mlp_kernel(%arg0: i32, %arg1: memref<2x16xf32, #tpu.memory_space<vmem>>, %arg2: memref<16x128xf32, #tpu.memory_space<vmem>>, %arg3: memref<1x128xf32, #tpu.memory_space<vmem>>, %arg4: memref<128x128xf32, #tpu.memory_space<vmem>>, %arg5: memref<1x128xf32, #tpu.memory_space<vmem>>, %arg6: memref<128x8xf32, #tpu.memory_space<vmem>>, %arg7: memref<1x8xf32, #tpu.memory_space<vmem>>, %arg8: memref<2x8xf32, #tpu.memory_space<vmem>>) attributes {dimension_semantics = [#tpu.dimension_semantics<parallel>], iteration_bounds = array<i64: 1>, scalar_prefetch = 0 : i64, scratch_operands = 0 : i64, tpu.core_type = #tpu.core_type<tc>, window_params = [{transform_indices = @transform_0, window_bounds = array<i64: 2, 16>}, {pipeline_mode = #tpu.pipeline_mode<synchronous>, transform_indices = @transform_1, window_bounds = array<i64: 16, 128>}, {pipeline_mode = #tpu.pipeline_mode<synchronous>, transform_indices = @transform_2, window_bounds = array<i64: 1, 128>}, {pipeline_mode = #tpu.pipeline_mode<synchronous>, transform_indices = @transform_3, window_bounds = array<i64: 128, 128>}, {pipeline_mode = #tpu.pipeline_mode<synchronous>, transform_indices = @transform_4, window_bounds = array<i64: 1, 128>}, {pipeline_mode = #tpu.pipeline_mode<synchronous>, transform_indices = @transform_5, window_bounds = array<i64: 128, 8>}, {pipeline_mode = #tpu.pipeline_mode<synchronous>, transform_indices = @transform_6, window_bounds = array<i64: 1, 8>}, {transform_indices = @transform_7, window_bounds = array<i64: 2, 8>}]} {
    %c0 = arith.constant 0 : index
    %c0_0 = arith.constant 0 : index
    %0 = vector.load %arg1[%c0, %c0_0] : memref<2x16xf32, #tpu.memory_space<vmem>>, vector<2x16xf32>
    %c0_1 = arith.constant 0 : index
    %c0_2 = arith.constant 0 : index
    %1 = vector.load %arg2[%c0_1, %c0_2] : memref<16x128xf32, #tpu.memory_space<vmem>>, vector<16x128xf32>
    %cst = arith.constant dense<0.000000e+00> : vector<2x128xf32>
    %2 = tpu.matmul %0, %1, %cst {dimension_numbers = #tpu.dot_dimension_numbers<[1], [0], [0], [1], [0, 0, 1, 1], [], []>} : vector<2x16xf32>, vector<16x128xf32>, vector<2x128xf32> -> vector<2x128xf32>
    %c0_3 = arith.constant 0 : index
    %c0_4 = arith.constant 0 : index
    %3 = vector.load %arg3[%c0_3, %c0_4] : memref<1x128xf32, #tpu.memory_space<vmem>>, vector<1x128xf32>
    %4 = vector.broadcast %3 : vector<1x128xf32> to vector<2x128xf32>
    %5 = arith.addf %2, %4 : vector<2x128xf32>
    %6 = math.tanh %5 : vector<2x128xf32>
    %c0_5 = arith.constant 0 : index
    %c0_6 = arith.constant 0 : index
    %7 = vector.load %arg4[%c0_5, %c0_6] : memref<128x128xf32, #tpu.memory_space<vmem>>, vector<128x128xf32>
    %cst_7 = arith.constant dense<0.000000e+00> : vector<2x128xf32>
    %8 = tpu.matmul %6, %7, %cst_7 {dimension_numbers = #tpu.dot_dimension_numbers<[1], [0], [0], [1], [0, 0, 1, 1], [], []>} : vector<2x128xf32>, vector<128x128xf32>, vector<2x128xf32> -> vector<2x128xf32>
    %c0_8 = arith.constant 0 : index
    %c0_9 = arith.constant 0 : index
    %9 = vector.load %arg5[%c0_8, %c0_9] : memref<1x128xf32, #tpu.memory_space<vmem>>, vector<1x128xf32>
    %10 = vector.broadcast %9 : vector<1x128xf32> to vector<2x128xf32>
    %11 = arith.addf %8, %10 : vector<2x128xf32>
    %12 = math.tanh %11 : vector<2x128xf32>
    %c0_10 = arith.constant 0 : index
    %c0_11 = arith.constant 0 : index
    %13 = vector.load %arg6[%c0_10, %c0_11] : memref<128x8xf32, #tpu.memory_space<vmem>>, vector<128x8xf32>
    %cst_12 = arith.constant dense<0.000000e+00> : vector<2x8xf32>
    %14 = tpu.matmul %12, %13, %cst_12 {dimension_numbers = #tpu.dot_dimension_numbers<[1], [0], [0], [1], [0, 0, 1, 1], [], []>} : vector<2x128xf32>, vector<128x8xf32>, vector<2x8xf32> -> vector<2x8xf32>
    %c0_13 = arith.constant 0 : index
    %c0_14 = arith.constant 0 : index
    %15 = vector.load %arg7[%c0_13, %c0_14] : memref<1x8xf32, #tpu.memory_space<vmem>>, vector<1x8xf32>
    %16 = vector.broadcast %15 : vector<1x8xf32> to vector<2x8xf32>
    %17 = arith.addf %14, %16 : vector<2x8xf32>
    %c0_15 = arith.constant 0 : index
    %c0_16 = arith.constant 0 : index
    %18 = vector.load %arg8[%c0_15, %c0_16] : memref<2x8xf32, #tpu.memory_space<vmem>>, vector<2x8xf32>
    tpu.vector_store %arg8[%c0_15, %c0_16], %17 {strides = array<i32>} : memref<2x8xf32, #tpu.memory_space<vmem>>, vector<2x8xf32>,
    return
  }
  func.func @transform_0(%arg0: i32) -> (i32, i32) {
    %c0_i32 = arith.constant 0 : i32
    %c0_i32_0 = arith.constant 0 : i32
    return %arg0, %c0_i32 : i32, i32
  }
  func.func @transform_1(%arg0: i32) -> (i32, i32) {
    %c0_i32 = arith.constant 0 : i32
    %c0_i32_0 = arith.constant 0 : i32
    %c0_i32_1 = arith.constant 0 : i32
    return %c0_i32, %c0_i32_0 : i32, i32
  }
  func.func @transform_2(%arg0: i32) -> (i32, i32) {
    %c0_i32 = arith.constant 0 : i32
    %c0_i32_0 = arith.constant 0 : i32
    %c0_i32_1 = arith.constant 0 : i32
    return %c0_i32, %c0_i32_0 : i32, i32
  }
  func.func @transform_3(%arg0: i32) -> (i32, i32) {
    %c0_i32 = arith.constant 0 : i32
    %c0_i32_0 = arith.constant 0 : i32
    %c0_i32_1 = arith.constant 0 : i32
    return %c0_i32, %c0_i32_0 : i32, i32
  }
  func.func @transform_4(%arg0: i32) -> (i32, i32) {
    %c0_i32 = arith.constant 0 : i32
    %c0_i32_0 = arith.constant 0 : i32
    %c0_i32_1 = arith.constant 0 : i32
    return %c0_i32, %c0_i32_0 : i32, i32
  }
  func.func @transform_5(%arg0: i32) -> (i32, i32) {
    %c0_i32 = arith.constant 0 : i32
    %c0_i32_0 = arith.constant 0 : i32
    %c0_i32_1 = arith.constant 0 : i32
    return %c0_i32, %c0_i32_0 : i32, i32
  }
  func.func @transform_6(%arg0: i32) -> (i32, i32) {
    %c0_i32 = arith.constant 0 : i32
    %c0_i32_0 = arith.constant 0 : i32
    %c0_i32_1 = arith.constant 0 : i32
    return %c0_i32, %c0_i32_0 : i32, i32
  }
  func.func @transform_7(%arg0: i32) -> (i32, i32) {
    %c0_i32 = arith.constant 0 : i32
    %c0_i32_0 = arith.constant 0 : i32
    return %arg0, %c0_i32 : i32, i32
  }
}

</mosaic_0001>

<llo_original>
// kernel: tpu_custom_call.1
$region0: #{tpu_custom_call.1}
  #allocation0 [shape = 'u32[]', space=smem, size = 0x4, offset = 0x4, fixed_abs, tag = 'smem constant byte address 0x4 - core index']
  #allocation1 [shape = 'u32[144,128]{1,0:T(1,128)}', space=vmem, size = 0x12000, scoped, tag = 'internal scratch']
  %s0 = inlined_call_operand.vmem [shape: f32[2,16], index: 0, kind: input, shape index: {}]
  %s1 = inlined_call_operand.vmem [shape: f32[16,128], index: 1, kind: input, shape index: {}]
  %s2 = inlined_call_operand.hbm [shape: f32[1,128], index: 2, kind: input, shape index: {}]
  %s3 = inlined_call_operand.vmem [shape: f32[128,128], index: 3, kind: input, shape index: {}]
  %s4 = inlined_call_operand.hbm [shape: f32[1,128], index: 4, kind: input, shape index: {}]
  %s5 = inlined_call_operand.vmem [shape: f32[128,8], index: 5, kind: input, shape index: {}]
  %s6 = inlined_call_operand.vmem [shape: f32[1,8], index: 6, kind: input, shape index: {}]
  %s7 = inlined_call_operand.hbm [shape: f32[2,8], index: 7, kind: output, shape index: {}]
  %s8 = sld [smem:[#allocation0]]
  $region46: #{tpu_custom_call.1} parent=0
    _
  %s10 = ssub.s32 1, %s8
  %s11 = scalar_select 0, %s10, %s8
  $region1: #{tpu_custom_call.1} parent=0
    #allocation2 [shape = 'u8[512]{0}', space=vmem, size = 0x400, scoped, tag = 'input window, operand 2, single buffered']
    #allocation3 [shape = 's32[1]{0}', space=sflag, size = 0x4, scoped, tag = 'scoped memory for tpu_custom_call.1']
    #allocation4 [shape = 's32[1]{0}', space=sflag, size = 0x4, scoped, tag = 'scoped memory for tpu_custom_call.1']
    #allocation5 [shape = 'u8[512]{0}', space=vmem, size = 0x400, scoped, tag = 'input window, operand 4, single buffered']
    #allocation6 [shape = 's32[1]{0}', space=sflag, size = 0x4, scoped, tag = 'scoped memory for tpu_custom_call.1']
    #allocation7 [shape = 'u8[1024]{0}', space=vmem, size = 0x400, scoped, tag = 'output window, operand 0, single buffered']
    %12 = vsyncpa [#allocation3], 0
    %13 = vsyncpa [#allocation6], 0
    %14 = vsyncpa [#allocation4], 0
    // Predicated region
    $region2: #{tpu_custom_call.1} parent=1 // pred_check
      _
    $region3: #{tpu_custom_call.1} parent=1 // pred_check_branch
      %16 = sbr.rel (0) target = $region5
    $region4: #{tpu_custom_call.1} parent=1 // pred_region
      _
    $region5: #{tpu_custom_call.1} parent=1 // pred_fallthru
      _
    // Predicated region
    $region6: #{tpu_custom_call.1} parent=1 // pred_check
      _
    $region7: #{tpu_custom_call.1} parent=1 // pred_check_branch
      %18 = sbr.rel (0) target = $region9
    $region8: #{tpu_custom_call.1} parent=1 // pred_region
      _
    $region9: #{tpu_custom_call.1} parent=1 // pred_fallthru
      _
    // Predicated region
    $region10: #{tpu_custom_call.1} parent=1 // pred_check
      _
    $region11: #{tpu_custom_call.1} parent=1 // pred_check_branch
      %20 = sbr.rel (0) target = $region13
    $region12: #{tpu_custom_call.1} parent=1 // pred_region
      %s22 = ssub.s32 16, 16
      %23 = vsyncadd [#allocation3], %s22
      %s25 = sshll.u32 [#allocation2], 4
      %s26 = int_to_ptr.vmem [resolvable:$true] %s25
      %28 = dma.hbm_to_vmem [thread:$0]  %s2, 16, %s26, [#allocation3]
    $region13: #{tpu_custom_call.1} parent=1 // pred_fallthru
      _
    // Predicated region
    $region14: #{tpu_custom_call.1} parent=1 // pred_check
      _
    $region15: #{tpu_custom_call.1} parent=1 // pred_check_branch
      %30 = sbr.rel (0) target = $region17
    $region16: #{tpu_custom_call.1} parent=1 // pred_region
      _
    $region17: #{tpu_custom_call.1} parent=1 // pred_fallthru
      _
    // Predicated region
    $region18: #{tpu_custom_call.1} parent=1 // pred_check
      _
    $region19: #{tpu_custom_call.1} parent=1 // pred_check_branch
      %32 = sbr.rel (0) target = $region21
    $region20: #{tpu_custom_call.1} parent=1 // pred_region
      %s34 = ssub.s32 16, 16
      %35 = vsyncadd [#allocation6], %s34
      %s37 = sshll.u32 [#allocation5], 4
      %s38 = int_to_ptr.vmem [resolvable:$true] %s37
      %40 = dma.hbm_to_vmem [thread:$0]  %s4, 16, %s38, [#allocation6]
    $region21: #{tpu_custom_call.1} parent=1 // pred_fallthru
      _
    // Predicated region
    $region22: #{tpu_custom_call.1} parent=1 // pred_check
      _
    $region23: #{tpu_custom_call.1} parent=1 // pred_check_branch
      %42 = sbr.rel (0) target = $region25
    $region24: #{tpu_custom_call.1} parent=1 // pred_region
      _
    $region25: #{tpu_custom_call.1} parent=1 // pred_fallthru
      _
    // Predicated region
    $region26: #{tpu_custom_call.1} parent=1 // pred_check
      _
    $region27: #{tpu_custom_call.1} parent=1 // pred_check_branch
      %44 = sbr.rel (0) target = $region29
    $region28: #{tpu_custom_call.1} parent=1 // pred_region
      _
    $region29: #{tpu_custom_call.1} parent=1 // pred_fallthru
      _
    // Predicated region
    $region30: #{tpu_custom_call.1} parent=1 // pred_check
      _
    $region31: #{tpu_custom_call.1} parent=1 // pred_check_branch
      %46 = sbr.rel (0) target = $region33
    $region32: #{tpu_custom_call.1} parent=1 // pred_region
      %47 = dma.done [#allocation3], 16
    $region33: #{tpu_custom_call.1} parent=1 // pred_fallthru
      _
    // Predicated region
    $region34: #{tpu_custom_call.1} parent=1 // pred_check
      _
    $region35: #{tpu_custom_call.1} parent=1 // pred_check_branch
      %49 = sbr.rel (0) target = $region37
    $region36: #{tpu_custom_call.1} parent=1 // pred_region
      %50 = dma.done [#allocation6], 16
    $region37: #{tpu_custom_call.1} parent=1 // pred_fallthru
      _
    %v51 = vld [vmem:[%s0] sm:$0x3]
    %v52 = vld [vmem:[%s1] sm:$0xff]
    %v53 = vld [vmem:[%s1 + $0x8] sm:$0xff]
    %v54 = vld [vmem:[#allocation2] sm:$0x1]
    %v56 = vlaneseq
    %v57 = vshrl.u32 %v56, 7
    %v58 = vsub.s32 0, %v57
    %v59 = vrot.slane %v54, %v58
    %vm61 = vcmask 130048
    %v63 = vsel %vm61, %v51, 0
    %65 = vmatprep.subr.mxu0 0.0
    %66 = vmatpush1.msra.mxu0 %v52
    %67 = vmatprep.subr.mxu0 0.0
    %68 = vmatpush1.msra.mxu0 %v53
    %69 = vmatprep.subr.mxu0 0.0
    %70 = vmatpush1.msra.mxu0 0.0
    %71 = vmatprep.subr.mxu0 0.0
    %72 = vmatpush1.msra.mxu0 0.0
    %73 = vmatprep.subr.mxu0 0.0
    %74 = vmatpush1.msra.mxu0 0.0
    %75 = vmatprep.subr.mxu0 0.0
    %76 = vmatpush1.msra.mxu0 0.0
    %77 = vmatprep.subr.mxu0 0.0
    %78 = vmatpush1.msra.mxu0 0.0
    %79 = vmatprep.subr.mxu0 0.0
    %80 = vmatpush1.msra.mxu0 0.0
    %81 = vmatprep.subr.mxu0 0.0
    %82 = vmatpush1.msra.mxu0 0.0
    %83 = vmatprep.subr.mxu0 0.0
    %84 = vmatpush1.msra.mxu0 0.0
    %85 = vmatprep.subr.mxu0 0.0
    %86 = vmatpush1.msra.mxu0 0.0
    %87 = vmatprep.subr.mxu0 0.0
    %88 = vmatpush1.msra.mxu0 0.0
    %89 = vmatprep.subr.mxu0 0.0
    %90 = vmatpush1.msra.mxu0 0.0
    %91 = vmatprep.subr.mxu0 0.0
    %92 = vmatpush1.msra.mxu0 0.0
    %93 = vmatprep.subr.mxu0 0.0
    %94 = vmatpush1.msra.mxu0 0.0
    %95 = vmatprep.subr.mxu0 0.0
    %96 = vmatpush1.msra.mxu0 0.0
    %97 = vmatprep.subr.mxu0 0.0
    %98 = vmatpush1.msra.mxu0 0.0
    %99 = vmatprep.subr.mxu0 0.0
    %100 = vmatpush1.msra.mxu0 0.0
    %101 = vmatprep.subr.mxu0 0.0
    %102 = vmatpush1.msra.mxu0 0.0
    %103 = vmatprep.subr.mxu0 0.0
    %104 = vmatpush1.msra.mxu0 0.0
    %105 = vmatprep.subr.mxu0 0.0
    %106 = vmatpush1.msra.mxu0 0.0
    %107 = vmatprep.subr.mxu0 0.0
    %108 = vmatpush1.msra.mxu0 0.0
    %109 = vmatprep.subr.mxu0 0.0
    %110 = vmatpush1.msra.mxu0 0.0
    %111 = vmatprep.subr.mxu0 0.0
    %112 = vmatpush1.msra.mxu0 0.0
    %113 = vmatprep.subr.mxu0 0.0
    %114 = vmatpush1.msra.mxu0 0.0
    %115 = vmatprep.subr.mxu0 0.0
    %116 = vmatpush1.msra.mxu0 0.0
    %117 = vmatprep.subr.mxu0 0.0
    %118 = vmatpush1.msra.mxu0 0.0
    %119 = vmatprep.subr.mxu0 0.0
    %120 = vmatpush1.msra.mxu0 0.0
    %121 = vmatprep.subr.mxu0 0.0
    %122 = vmatpush1.msra.mxu0 0.0
    %123 = vmatprep.subr.mxu0 0.0
    %124 = vmatpush1.msra.mxu0 0.0
    %125 = vmatprep.subr.mxu0 0.0
    %126 = vmatpush1.msra.mxu0 0.0
    %127 = vmatprep.subr.mxu0 0.0
    %128 = vmatpush1.msra.mxu0 0.0
    %129 = vmatprep.mubr.f32.mxu0 0.0
    %130 = vmatmul.mubr.f32.gmra.mrb[0].mxu0 %v63
    %v131 = vpop.f32.mrb[0].mxu0
    %v132 = vadd.f32 %v59, %v131
    %v133 = vpop.f32.mrb[0].mxu0
    %134 = vdwg.mxu0
    %v135 = vtanh.pop %v132
    %v136 = vld [vmem:[%s3] sm:$0xff]
    %v137 = vld [vmem:[%s3 + $0x8] sm:$0xff]
    %v138 = vld [vmem:[%s3 + $0x10] sm:$0xff]
    %v139 = vld [vmem:[%s3 + $0x18] sm:$0xff]
    %v140 = vld [vmem:[%s3 + $0x20] sm:$0xff]
    %v141 = vld [vmem:[%s3 + $0x28] sm:$0xff]
    %v142 = vld [vmem:[%s3 + $0x30] sm:$0xff]
    %v143 = vld [vmem:[%s3 + $0x38] sm:$0xff]
    %v144 = vld [vmem:[%s3 + $0x40] sm:$0xff]
    %v145 = vld [vmem:[%s3 + $0x48] sm:$0xff]
    %v146 = vld [vmem:[%s3 + $0x50] sm:$0xff]
    %v147 = vld [vmem:[%s3 + $0x58] sm:$0xff]
    %v148 = vld [vmem:[%s3 + $0x60] sm:$0xff]
    %v149 = vld [vmem:[%s3 + $0x68] sm:$0xff]
    %v150 = vld [vmem:[%s3 + $0x70] sm:$0xff]
    %v151 = vld [vmem:[%s3 + $0x78] sm:$0xff]
    %v152 = vld [vmem:[#allocation5] sm:$0x1]
    %v154 = vlaneseq
    %v155 = vshrl.u32 %v154, 7
    %v156 = vsub.s32 0, %v155
    %v157 = vrot.slane %v152, %v156
    %159 = vmatprep.subr.mxu0 0.0
    %160 = vmatpush1.msra.mxu0 %v136
    %161 = vmatprep.subr.mxu0 0.0
    %162 = vmatpush1.msra.mxu0 %v137
    %163 = vmatprep.subr.mxu0 0.0
    %164 = vmatpush1.msra.mxu0 %v138
    %165 = vmatprep.subr.mxu0 0.0
    %166 = vmatpush1.msra.mxu0 %v139
    %167 = vmatprep.subr.mxu0 0.0
    %168 = vmatpush1.msra.mxu0 %v140
    %169 = vmatprep.subr.mxu0 0.0
    %170 = vmatpush1.msra.mxu0 %v141
    %171 = vmatprep.subr.mxu0 0.0
    %172 = vmatpush1.msra.mxu0 %v142
    %173 = vmatprep.subr.mxu0 0.0
    %174 = vmatpush1.msra.mxu0 %v143
    %175 = vmatprep.subr.mxu0 0.0
    %176 = vmatpush1.msra.mxu0 %v144
    %177 = vmatprep.subr.mxu0 0.0
    %178 = vmatpush1.msra.mxu0 %v145
    %179 = vmatprep.subr.mxu0 0.0
    %180 = vmatpush1.msra.mxu0 %v146
    %181 = vmatprep.subr.mxu0 0.0
    %182 = vmatpush1.msra.mxu0 %v147
    %183 = vmatprep.subr.mxu0 0.0
    %184 = vmatpush1.msra.mxu0 %v148
    %185 = vmatprep.subr.mxu0 0.0
    %186 = vmatpush1.msra.mxu0 %v149
    %187 = vmatprep.subr.mxu0 0.0
    %188 = vmatpush1.msra.mxu0 %v150
    %189 = vmatprep.subr.mxu0 0.0
    %190 = vmatpush1.msra.mxu0 %v151
    %191 = vmatprep.subr.mxu0 0.0
    %192 = vmatpush1.msra.mxu0 0.0
    %193 = vmatprep.subr.mxu0 0.0
    %194 = vmatpush1.msra.mxu0 0.0
    %195 = vmatprep.subr.mxu0 0.0
    %196 = vmatpush1.msra.mxu0 0.0
    %197 = vmatprep.subr.mxu0 0.0
    %198 = vmatpush1.msra.mxu0 0.0
    %199 = vmatprep.subr.mxu0 0.0
    %200 = vmatpush1.msra.mxu0 0.0
    %201 = vmatprep.subr.mxu0 0.0
    %202 = vmatpush1.msra.mxu0 0.0
    %203 = vmatprep.subr.mxu0 0.0
    %204 = vmatpush1.msra.mxu0 0.0
    %205 = vmatprep.subr.mxu0 0.0
    %206 = vmatpush1.msra.mxu0 0.0
    %207 = vmatprep.subr.mxu0 0.0
    %208 = vmatpush1.msra.mxu0 0.0
    %209 = vmatprep.subr.mxu0 0.0
    %210 = vmatpush1.msra.mxu0 0.0
    %211 = vmatprep.subr.mxu0 0.0
    %212 = vmatpush1.msra.mxu0 0.0
    %213 = vmatprep.subr.mxu0 0.0
    %214 = vmatpush1.msra.mxu0 0.0
    %215 = vmatprep.subr.mxu0 0.0
    %216 = vmatpush1.msra.mxu0 0.0
    %217 = vmatprep.subr.mxu0 0.0
    %218 = vmatpush1.msra.mxu0 0.0
    %219 = vmatprep.subr.mxu0 0.0
    %220 = vmatpush1.msra.mxu0 0.0
    %221 = vmatprep.subr.mxu0 0.0
    %222 = vmatpush1.msra.mxu0 0.0
    %223 = vmatprep.mubr.f32.mxu0 0.0
    %224 = vmatmul.mubr.f32.gmra.mrb[0].mxu0 %v135
    %v225 = vpop.f32.mrb[0].mxu0
    %v226 = vadd.f32 %v157, %v225
    %v227 = vpop.f32.mrb[0].mxu0
    %228 = vdwg.mxu0
    %v229 = vtanh.pop %v226
    %v230 = vld [vmem:[%s5] sm:$0xff]
    %v231 = vld [vmem:[%s5 + $0x8] sm:$0xff]
    %v232 = vld [vmem:[%s5 + $0x10] sm:$0xff]
    %v233 = vld [vmem:[%s5 + $0x18] sm:$0xff]
    %v234 = vld [vmem:[%s5 + $0x20] sm:$0xff]
    %v235 = vld [vmem:[%s5 + $0x28] sm:$0xff]
    %v236 = vld [vmem:[%s5 + $0x30] sm:$0xff]
    %v237 = vld [vmem:[%s5 + $0x38] sm:$0xff]
    %v238 = vld [vmem:[%s5 + $0x40] sm:$0xff]
    %v239 = vld [vmem:[%s5 + $0x48] sm:$0xff]
    %v240 = vld [vmem:[%s5 + $0x50] sm:$0xff]
    %v241 = vld [vmem:[%s5 + $0x58] sm:$0xff]
    %v242 = vld [vmem:[%s5 + $0x60] sm:$0xff]
    %v243 = vld [vmem:[%s5 + $0x68] sm:$0xff]
    %v244 = vld [vmem:[%s5 + $0x70] sm:$0xff]
    %v245 = vld [vmem:[%s5 + $0x78] sm:$0xff]
    %v246 = vld [vmem:[%s6] sm:$0x1]
    %v248 = vlaneseq
    %v249 = vshrl.u32 %v248, 7
    %v250 = vsub.s32 0, %v249
    %v251 = vrot.slane %v246, %v250
    %253 = vmatprep.subr.mxu0 0.0
    %254 = vmatpush1.msra.mxu0 %v230
    %255 = vmatprep.subr.mxu0 0.0
    %256 = vmatpush1.msra.mxu0 %v231
    %257 = vmatprep.subr.mxu0 0.0
    %258 = vmatpush1.msra.mxu0 %v232
    %259 = vmatprep.subr.mxu0 0.0
    %260 = vmatpush1.msra.mxu0 %v233
    %261 = vmatprep.subr.mxu0 0.0
    %262 = vmatpush1.msra.mxu0 %v234
    %263 = vmatprep.subr.mxu0 0.0
    %264 = vmatpush1.msra.mxu0 %v235
    %265 = vmatprep.subr.mxu0 0.0
    %266 = vmatpush1.msra.mxu0 %v236
    %267 = vmatprep.subr.mxu0 0.0
    %268 = vmatpush1.msra.mxu0 %v237
    %269 = vmatprep.subr.mxu0 0.0
    %270 = vmatpush1.msra.mxu0 %v238
    %271 = vmatprep.subr.mxu0 0.0
    %272 = vmatpush1.msra.mxu0 %v239
    %273 = vmatprep.subr.mxu0 0.0
    %274 = vmatpush1.msra.mxu0 %v240
    %275 = vmatprep.subr.mxu0 0.0
    %276 = vmatpush1.msra.mxu0 %v241
    %277 = vmatprep.subr.mxu0 0.0
    %278 = vmatpush1.msra.mxu0 %v242
    %279 = vmatprep.subr.mxu0 0.0
    %280 = vmatpush1.msra.mxu0 %v243
    %281 = vmatprep.subr.mxu0 0.0
    %282 = vmatpush1.msra.mxu0 %v244
    %283 = vmatprep.subr.mxu0 0.0
    %284 = vmatpush1.msra.mxu0 %v245
    %285 = vmatprep.subr.mxu0 0.0
    %286 = vmatpush1.msra.mxu0 0.0
    %287 = vmatprep.subr.mxu0 0.0
    %288 = vmatpush1.msra.mxu0 0.0
    %289 = vmatprep.subr.mxu0 0.0
    %290 = vmatpush1.msra.mxu0 0.0
    %291 = vmatprep.subr.mxu0 0.0
    %292 = vmatpush1.msra.mxu0 0.0
    %293 = vmatprep.subr.mxu0 0.0
    %294 = vmatpush1.msra.mxu0 0.0
    %295 = vmatprep.subr.mxu0 0.0
    %296 = vmatpush1.msra.mxu0 0.0
    %297 = vmatprep.subr.mxu0 0.0
    %298 = vmatpush1.msra.mxu0 0.0
    %299 = vmatprep.subr.mxu0 0.0
    %300 = vmatpush1.msra.mxu0 0.0
    %301 = vmatprep.subr.mxu0 0.0
    %302 = vmatpush1.msra.mxu0 0.0
    %303 = vmatprep.subr.mxu0 0.0
    %304 = vmatpush1.msra.mxu0 0.0
    %305 = vmatprep.subr.mxu0 0.0
    %306 = vmatpush1.msra.mxu0 0.0
    %307 = vmatprep.subr.mxu0 0.0
    %308 = vmatpush1.msra.mxu0 0.0
    %309 = vmatprep.subr.mxu0 0.0
    %310 = vmatpush1.msra.mxu0 0.0
    %311 = vmatprep.subr.mxu0 0.0
    %312 = vmatpush1.msra.mxu0 0.0
    %313 = vmatprep.subr.mxu0 0.0
    %314 = vmatpush1.msra.mxu0 0.0
    %315 = vmatprep.subr.mxu0 0.0
    %316 = vmatpush1.msra.mxu0 0.0
    %317 = vmatprep.mubr.f32.mxu0 0.0
    %318 = vmatmul.mubr.f32.gmra.mrb[0].mxu0 %v229
    %v319 = vpop.f32.mrb[0].mxu0
    %v320 = vadd.f32 %v251, %v319
    %v321 = vpop.f32.mrb[0].mxu0
    %322 = vdwg.mxu0
    %vm323 = vcmask 58368
    %324 = vst.msk [vmem:[#allocation7] sm:$0x3] %vm323, %v320
    // Predicated region
    $region38: #{tpu_custom_call.1} parent=1 // pred_check
      _
    $region39: #{tpu_custom_call.1} parent=1 // pred_check_branch
      %326 = sbr.rel (0) target = $region41
    $region40: #{tpu_custom_call.1} parent=1 // pred_region
      %s328 = ssub.s32 32, 32
      %329 = vsyncadd [#allocation4], %s328
      %s331 = sshll.u32 [#allocation7], 4
      %s332 = int_to_ptr.vmem [resolvable:$true] %s331
      %334 = dma.vmem_to_hbm [thread:$0]  %s332, 32, %s7, [#allocation4]
    $region41: #{tpu_custom_call.1} parent=1 // pred_fallthru
      _
    // Predicated region
    $region42: #{tpu_custom_call.1} parent=1 // pred_check
      _
    $region43: #{tpu_custom_call.1} parent=1 // pred_check_branch
      %336 = sbr.rel (0) target = $region45
    $region44: #{tpu_custom_call.1} parent=1 // pred_region
      %337 = dma.done [#allocation4], 32
    $region45: #{tpu_custom_call.1} parent=1 // pred_fallthru
      _
    %338 = vsyncpa [#allocation3], 1
    %339 = vsyncpa [#allocation6], 1
    %340 = vsyncpa [#allocation4], 1

</llo_original>
